<compile_context>
chip_gen: v6e
topology: v6e:2x2x1
jax: 0.10.0
libtpu: 0.0.40
codegen_flags: <defaults>
</compile_context>

<pallas_src>
import functools

import jax
import jax.numpy as jnp
from jax.experimental import pallas as pl
from jax.experimental.pallas import tpu as pltpu


def _gamma_beta_kernel(x_ref, wg_ref, wb_ref, bg_ref, bb_ref, g_ref, b_ref):
    """One (TB, TN) tile of gamma = x @ Wg^T + bg and beta = x @ Wb^T + bb.

    The f32 output blocks are resident across the K grid axis (innermost), so
    we accumulate straight into them; bias seeds the accumulator at k == 0.
    """
    k = pl.program_id(2)

    @pl.when(k == 0)
    def _():
        g_ref[...] = jnp.broadcast_to(bg_ref[...], g_ref.shape)
        b_ref[...] = jnp.broadcast_to(bb_ref[...], b_ref.shape)

    x = x_ref[...]  # bf16 tile, loaded once, fed to both MXU passes
    g_ref[...] += jnp.dot(x, wg_ref[...], preferred_element_type=jnp.float32)
    b_ref[...] += jnp.dot(x, wb_ref[...], preferred_element_type=jnp.float32)


def _round_up(n: int, m: int) -> int:
    return ((n + m - 1) // m) * m


def _tile_and_pad(dim: int, target: int, align: int) -> tuple[int, int]:
    """Pick a tile <= target and the zero-padded extent it divides.

    Small dims use the full extent (always a legal block shape); large dims
    use an aligned tile and the array is zero-padded up to a multiple of it,
    keeping VMEM bounded and K-axis pipelining intact.
    """
    if dim <= target:
        return dim, dim
    tile = max((target // align) * align, align)
    return tile, _round_up(dim, tile)


@functools.partial(jax.jit, static_argnames=("tb", "tn", "tk"))
def gamma_beta(x, wgt, wbt, bg, bb, *, tb=1024, tn=512, tk=512):
    """Pallas GammaBeta.forward.

    Args:
      x:   (B, H_in)      float32 or bfloat16 activations.
      wgt: (H_in, H_out)  gamma half of the weight, transposed (cast to bf16).
      wbt: (H_in, H_out)  beta  half of the weight, transposed (cast to bf16).
      bg:  (1, H_out)     gamma bias (kept f32).
      bb:  (1, H_out)     beta  bias (kept f32).

    Returns:
      (gamma, beta), each (B, H_out, 1) float32, matching the PyTorch module.
    """
    B, H_in = x.shape
    H_in_w, H_out = wgt.shape
    assert H_in == H_in_w
    assert wbt.shape == (H_in, H_out)
    assert bg.shape == (1, H_out) and bb.shape == (1, H_out)

    tb_e, B_p = _tile_and_pad(B, tb, 8)        # sublane-aligned batch tile
    tn_e, N_p = _tile_and_pad(H_out, tn, 128)  # lane-aligned output tile
    tk_e, K_p = _tile_and_pad(H_in, tk, 128)   # lane-aligned reduction tile

    # bf16 MXU operands (f32 accumulate in-kernel) halve HBM traffic.
    xb = x.astype(jnp.bfloat16)
    wgt = wgt.astype(jnp.bfloat16)
    wbt = wbt.astype(jnp.bfloat16)
    bg = bg.astype(jnp.float32)
    bb = bb.astype(jnp.float32)

    # Zero-padding: zeros contribute nothing to the matmul, and padded output
    # rows/cols are sliced away below.  (Weight padding would be hoisted to
    # init time in a real module; it is a no-op for already-aligned shapes.)
    if B_p != B or K_p != H_in:
        xb = jnp.pad(xb, ((0, B_p - B), (0, K_p - H_in)))
    if K_p != H_in or N_p != H_out:
        wgt = jnp.pad(wgt, ((0, K_p - H_in), (0, N_p - H_out)))
        wbt = jnp.pad(wbt, ((0, K_p - H_in), (0, N_p - H_out)))
    if N_p != H_out:
        bg = jnp.pad(bg, ((0, 0), (0, N_p - H_out)))
        bb = jnp.pad(bb, ((0, 0), (0, N_p - H_out)))

    # Grid order (j, i, k): N outermost so v7x megacore splits weight columns
    # (each core streams a disjoint slab of W), K innermost for accumulation.
    grid = (N_p // tn_e, B_p // tb_e, K_p // tk_e)

    # Double-buffered VMEM footprint estimate -> explicit scoped-VMEM limit
    # (2x margin, capped at 48 MiB: safe on v5e/v6e/v7x).
    est = (2 * tb_e * tk_e * 2          # x tiles (bf16)
           + 2 * 2 * tk_e * tn_e * 2    # two weight-half tiles (bf16)
           + 2 * 2 * tb_e * tn_e * 4    # two resident f32 output tiles
           + 2 * 2 * tn_e * 4)          # bias tiles
    vmem_limit = int(min(48 * 1024 * 1024, max(16 * 1024 * 1024, 2 * est)))

    flops = 4 * B_p * K_p * N_p  # two (B,K)x(K,N) matmuls
    bytes_accessed = (B_p * K_p * 2 + 2 * K_p * N_p * 2
                      + 2 * B_p * N_p * 4 + 2 * N_p * 4)

    g, b = pl.pallas_call(
        _gamma_beta_kernel,
        out_shape=(jax.ShapeDtypeStruct((B_p, N_p), jnp.float32),
                   jax.ShapeDtypeStruct((B_p, N_p), jnp.float32)),
        grid_spec=pltpu.PrefetchScalarGridSpec(
            num_scalar_prefetch=0,
            grid=grid,
            in_specs=[
                pl.BlockSpec((tb_e, tk_e), lambda j, i, k: (i, k)),   # x
                pl.BlockSpec((tk_e, tn_e), lambda j, i, k: (k, j)),   # Wg^T
                pl.BlockSpec((tk_e, tn_e), lambda j, i, k: (k, j)),   # Wb^T
                pl.BlockSpec((1, tn_e), lambda j, i, k: (0, j)),      # bias g
                pl.BlockSpec((1, tn_e), lambda j, i, k: (0, j)),      # bias b
            ],
            out_specs=[
                pl.BlockSpec((tb_e, tn_e), lambda j, i, k: (i, j)),   # gamma
                pl.BlockSpec((tb_e, tn_e), lambda j, i, k: (i, j)),   # beta
            ],
        ),
        compiler_params=pltpu.CompilerParams(
            dimension_semantics=("parallel", "parallel", "arbitrary"),
            vmem_limit_bytes=vmem_limit,
        ),
        cost_estimate=pl.CostEstimate(
            flops=flops, transcendentals=0, bytes_accessed=bytes_accessed),
    )(xb, wgt, wbt, bg, bb)

    # Glue from the PyTorch module: drop padding (no-op when unpadded) and
    # trailing unsqueeze(-1).
    gamma = g[:B, :H_out, None]
    beta = b[:B, :H_out, None]
    return gamma, beta


if __name__ == "__main__":
    # Small shapes consistent with the module.
    batch = 8
    input_dim = 32
    output_dim = 16

    key = jax.random.PRNGKey(0)
    kx, kw, kb = jax.random.split(key, 3)

    # Deterministic parameter init (PyTorch nn.Linear-style uniform bound).
    bound = 1.0 / (input_dim ** 0.5)
    weight = jax.random.uniform(
        kw, (2 * output_dim, input_dim), jnp.float32, minval=-bound, maxval=bound
    )
    bias = jax.random.uniform(
        kb, (2 * output_dim,), jnp.float32, minval=-bound, maxval=bound
    )
    x = jax.random.normal(kx, (batch, input_dim), jnp.float32)

    # "Init time" parameter prep, hoisted out of the per-call path:
    # split Linear into gamma/beta halves, transpose, cast MXU operands bf16.
    wgt = jnp.asarray(weight[:output_dim].T, jnp.bfloat16)   # (H_in, H_out)
    wbt = jnp.asarray(weight[output_dim:].T, jnp.bfloat16)   # (H_in, H_out)
    bg = bias[:output_dim].reshape(1, -1).astype(jnp.float32)
    bb = bias[output_dim:].reshape(1, -1).astype(jnp.float32)

    gamma, beta = gamma_beta(x, wgt, wbt, bg, bb)
    jax.block_until_ready((gamma, beta))

    # Reference in plain JAX with the same bf16-rounded operands (bf16 products
    # are exact in f32, so only accumulation-order noise remains).
    xw = x.astype(jnp.bfloat16).astype(jnp.float32)
    ww = weight.astype(jnp.bfloat16).astype(jnp.float32)
    y_ref = xw @ ww.T + bias
    gamma_ref = y_ref[:, :output_dim, None]
    beta_ref = y_ref[:, output_dim:, None]

    assert gamma.shape == (batch, output_dim, 1)
    assert beta.shape == (batch, output_dim, 1)
    assert jnp.allclose(gamma, gamma_ref, atol=1e-4, rtol=1e-4)
    assert jnp.allclose(beta, beta_ref, atol=1e-4, rtol=1e-4)

    print("KERNEL_OK")
</pallas_src>

<mosaic_0001>
module attributes {stable_mosaic.version = 11 : i64} {
  func.func @_gamma_beta_kernel(%arg0: i32, %arg1: i32, %arg2: i32, %arg3: memref<8x32xbf16, #tpu.memory_space<vmem>>, %arg4: memref<32x16xbf16, #tpu.memory_space<vmem>>, %arg5: memref<32x16xbf16, #tpu.memory_space<vmem>>, %arg6: memref<1x16xf32, #tpu.memory_space<vmem>>, %arg7: memref<1x16xf32, #tpu.memory_space<vmem>>, %arg8: memref<8x16xf32, #tpu.memory_space<vmem>>, %arg9: memref<8x16xf32, #tpu.memory_space<vmem>>) attributes {dimension_semantics = [#tpu.dimension_semantics<parallel>, #tpu.dimension_semantics<parallel>, #tpu.dimension_semantics<arbitrary>], iteration_bounds = array<i64: 1, 1, 1>, scalar_prefetch = 0 : i64, scratch_operands = 0 : i64, tpu.core_type = #tpu.core_type<tc>, window_params = [{transform_indices = @transform_0, window_bounds = array<i64: 8, 32>}, {transform_indices = @transform_1, window_bounds = array<i64: 32, 16>}, {transform_indices = @transform_2, window_bounds = array<i64: 32, 16>}, {transform_indices = @transform_3, window_bounds = array<i64: 1, 16>}, {transform_indices = @transform_4, window_bounds = array<i64: 1, 16>}, {transform_indices = @transform_5, window_bounds = array<i64: 8, 16>}, {transform_indices = @transform_6, window_bounds = array<i64: 8, 16>}]} {
    %c0_i32 = arith.constant 0 : i32
    %0 = arith.cmpi eq, %arg2, %c0_i32 : i32
    %1 = arith.extui %0 : i1 to i32
    %c0_i32_0 = arith.constant 0 : i32
    %2 = arith.cmpi ne, %1, %c0_i32_0 : i32
    scf.if %2 {
      %c0_15 = arith.constant 0 : index
      %c0_16 = arith.constant 0 : index
      %14 = vector.load %arg6[%c0_15, %c0_16] : memref<1x16xf32, #tpu.memory_space<vmem>>, vector<1x16xf32>
      %15 = vector.shape_cast %14 : vector<1x16xf32> to vector<1x16xf32>
      %16 = vector.broadcast %15 : vector<1x16xf32> to vector<8x16xf32>
      %c0_17 = arith.constant 0 : index
      %c0_18 = arith.constant 0 : index
      %17 = vector.load %arg8[%c0_17, %c0_18] : memref<8x16xf32, #tpu.memory_space<vmem>>, vector<8x16xf32>
      tpu.vector_store %arg8[%c0_17, %c0_18], %16 {strides = array<i32>} : memref<8x16xf32, #tpu.memory_space<vmem>>, vector<8x16xf32>,
      %c0_19 = arith.constant 0 : index
      %c0_20 = arith.constant 0 : index
      %18 = vector.load %arg7[%c0_19, %c0_20] : memref<1x16xf32, #tpu.memory_space<vmem>>, vector<1x16xf32>
      %19 = vector.shape_cast %18 : vector<1x16xf32> to vector<1x16xf32>
      %20 = vector.broadcast %19 : vector<1x16xf32> to vector<8x16xf32>
      %c0_21 = arith.constant 0 : index
      %c0_22 = arith.constant 0 : index
      %21 = vector.load %arg9[%c0_21, %c0_22] : memref<8x16xf32, #tpu.memory_space<vmem>>, vector<8x16xf32>
      tpu.vector_store %arg9[%c0_21, %c0_22], %20 {strides = array<i32>} : memref<8x16xf32, #tpu.memory_space<vmem>>, vector<8x16xf32>,
    } else {
    }
    %c0 = arith.constant 0 : index
    %c0_1 = arith.constant 0 : index
    %3 = vector.load %arg3[%c0, %c0_1] : memref<8x32xbf16, #tpu.memory_space<vmem>>, vector<8x32xbf16>
    %c0_2 = arith.constant 0 : index
    %c0_3 = arith.constant 0 : index
    %4 = vector.load %arg8[%c0_2, %c0_3] : memref<8x16xf32, #tpu.memory_space<vmem>>, vector<8x16xf32>
    %c0_4 = arith.constant 0 : index
    %c0_5 = arith.constant 0 : index
    %5 = vector.load %arg4[%c0_4, %c0_5] : memref<32x16xbf16, #tpu.memory_space<vmem>>, vector<32x16xbf16>
    %cst = arith.constant dense<0.000000e+00> : vector<8x16xf32>
    %6 = tpu.matmul %3, %5, %cst {dimension_numbers = #tpu.dot_dimension_numbers<[1], [0], [0], [1], [0, 0, 1, 1], [], []>} : vector<8x32xbf16>, vector<32x16xbf16>, vector<8x16xf32> -> vector<8x16xf32>
    %7 = arith.addf %4, %6 : vector<8x16xf32>
    %c0_6 = arith.constant 0 : index
    %c0_7 = arith.constant 0 : index
    %8 = vector.load %arg8[%c0_6, %c0_7] : memref<8x16xf32, #tpu.memory_space<vmem>>, vector<8x16xf32>
    tpu.vector_store %arg8[%c0_6, %c0_7], %7 {strides = array<i32>} : memref<8x16xf32, #tpu.memory_space<vmem>>, vector<8x16xf32>,
    %c0_8 = arith.constant 0 : index
    %c0_9 = arith.constant 0 : index
    %9 = vector.load %arg9[%c0_8, %c0_9] : memref<8x16xf32, #tpu.memory_space<vmem>>, vector<8x16xf32>
    %c0_10 = arith.constant 0 : index
    %c0_11 = arith.constant 0 : index
    %10 = vector.load %arg5[%c0_10, %c0_11] : memref<32x16xbf16, #tpu.memory_space<vmem>>, vector<32x16xbf16>
    %cst_12 = arith.constant dense<0.000000e+00> : vector<8x16xf32>
    %11 = tpu.matmul %3, %10, %cst_12 {dimension_numbers = #tpu.dot_dimension_numbers<[1], [0], [0], [1], [0, 0, 1, 1], [], []>} : vector<8x32xbf16>, vector<32x16xbf16>, vector<8x16xf32> -> vector<8x16xf32>
    %12 = arith.addf %9, %11 : vector<8x16xf32>
    %c0_13 = arith.constant 0 : index
    %c0_14 = arith.constant 0 : index
    %13 = vector.load %arg9[%c0_13, %c0_14] : memref<8x16xf32, #tpu.memory_space<vmem>>, vector<8x16xf32>
    tpu.vector_store %arg9[%c0_13, %c0_14], %12 {strides = array<i32>} : memref<8x16xf32, #tpu.memory_space<vmem>>, vector<8x16xf32>,
    return
  }
  func.func @transform_0(%arg0: i32, %arg1: i32, %arg2: i32) -> (i32, i32) {
    %c0_i32 = arith.constant 0 : i32
    return %arg1, %arg2 : i32, i32
  }
  func.func @transform_1(%arg0: i32, %arg1: i32, %arg2: i32) -> (i32, i32) {
    %c0_i32 = arith.constant 0 : i32
    return %arg2, %arg0 : i32, i32
  }
  func.func @transform_2(%arg0: i32, %arg1: i32, %arg2: i32) -> (i32, i32) {
    %c0_i32 = arith.constant 0 : i32
    return %arg2, %arg0 : i32, i32
  }
  func.func @transform_3(%arg0: i32, %arg1: i32, %arg2: i32) -> (i32, i32) {
    %c0_i32 = arith.constant 0 : i32
    %c0_i32_0 = arith.constant 0 : i32
    return %c0_i32, %arg0 : i32, i32
  }
  func.func @transform_4(%arg0: i32, %arg1: i32, %arg2: i32) -> (i32, i32) {
    %c0_i32 = arith.constant 0 : i32
    %c0_i32_0 = arith.constant 0 : i32
    return %c0_i32, %arg0 : i32, i32
  }
  func.func @transform_5(%arg0: i32, %arg1: i32, %arg2: i32) -> (i32, i32) {
    %c0_i32 = arith.constant 0 : i32
    return %arg1, %arg0 : i32, i32
  }
  func.func @transform_6(%arg0: i32, %arg1: i32, %arg2: i32) -> (i32, i32) {
    %c0_i32 = arith.constant 0 : i32
    return %arg1, %arg0 : i32, i32
  }
}

</mosaic_0001>

<llo_original>
// kernel: gamma_beta.1
$region0: #{gamma_beta.1}
  #allocation0 [shape = 'u32[]', space=smem, size = 0x4, offset = 0x4, fixed_abs, tag = 'smem constant byte address 0x4 - core index']
  #allocation1 [shape = 'u32[144,128]{1,0:T(1,128)}', space=vmem, size = 0x12000, scoped, tag = 'internal scratch']
  %s0 = inlined_call_operand.vmem [shape: bf16[8,32], index: 0, kind: input, shape index: {}]
  %s1 = inlined_call_operand.vmem [shape: bf16[32,16], index: 1, kind: input, shape index: {}]
  %s2 = inlined_call_operand.vmem [shape: bf16[32,16], index: 2, kind: input, shape index: {}]
  %s3 = inlined_call_operand.vmem [shape: f32[1,16], index: 3, kind: input, shape index: {}]
  %s4 = inlined_call_operand.vmem [shape: f32[1,16], index: 4, kind: input, shape index: {}]
  %s5 = inlined_call_operand.hbm [shape: f32[8,16], index: 5, kind: output, shape index: {0}]
  %s6 = inlined_call_operand.hbm [shape: f32[8,16], index: 6, kind: output, shape index: {1}]
  %7 = xla_tuple %s5, %s6
  %s8 = sld [smem:[#allocation0]]
  $region42: #{gamma_beta.1} parent=0
    _
  %s10 = ssub.s32 1, %s8
  %s11 = scalar_select 0, %s10, %s8
  $region1: #{gamma_beta.1} parent=0
    #allocation2 [shape = 'u8[4096]{0}', space=vmem, size = 0x1000, scoped, tag = 'output window, operand 0, single buffered']
    #allocation3 [shape = 's32[1]{0}', space=sflag, size = 0x4, scoped, tag = 'scoped memory for gamma_beta.1']
    #allocation4 [shape = 'u8[4096]{0}', space=vmem, size = 0x1000, scoped, tag = 'output window, operand 1, single buffered']
    #allocation5 [shape = 's32[1]{0}', space=sflag, size = 0x4, scoped, tag = 'scoped memory for gamma_beta.1']
    %12 = vsyncpa [#allocation3], 0
    %13 = vsyncpa [#allocation5], 0
    // Predicated region
    $region2: #{gamma_beta.1} parent=1 // pred_check
      _
    $region3: #{gamma_beta.1} parent=1 // pred_check_branch
      %15 = sbr.rel (0) target = $region5
    $region4: #{gamma_beta.1} parent=1 // pred_region
      _
    $region5: #{gamma_beta.1} parent=1 // pred_fallthru
      _
    // Predicated region
    $region6: #{gamma_beta.1} parent=1 // pred_check
      _
    $region7: #{gamma_beta.1} parent=1 // pred_check_branch
      %17 = sbr.rel (0) target = $region9
    $region8: #{gamma_beta.1} parent=1 // pred_region
      _
    $region9: #{gamma_beta.1} parent=1 // pred_fallthru
      _
    // Predicated region
    $region10: #{gamma_beta.1} parent=1 // pred_check
      _
    $region11: #{gamma_beta.1} parent=1 // pred_check_branch
      %19 = sbr.rel (0) target = $region13
    $region12: #{gamma_beta.1} parent=1 // pred_region
      _
    $region13: #{gamma_beta.1} parent=1 // pred_fallthru
      _
    // Predicated region
    $region14: #{gamma_beta.1} parent=1 // pred_check
      _
    $region15: #{gamma_beta.1} parent=1 // pred_check_branch
      %21 = sbr.rel (0) target = $region17
    $region16: #{gamma_beta.1} parent=1 // pred_region
      _
    $region17: #{gamma_beta.1} parent=1 // pred_fallthru
      _
    // Predicated region
    $region18: #{gamma_beta.1} parent=1 // pred_check
      _
    $region19: #{gamma_beta.1} parent=1 // pred_check_branch
      %23 = sbr.rel (0) target = $region21
    $region20: #{gamma_beta.1} parent=1 // pred_region
      _
    $region21: #{gamma_beta.1} parent=1 // pred_fallthru
      _
    %p25 = scmp.eq.s32.totalorder 0, 0
    // Predicated region
    $region22: #{gamma_beta.1} parent=1 // pred_check
      %p26 = pneg %p25
    $region23: #{gamma_beta.1} parent=1 // pred_check_branch
      %28 = sbr.rel (%p26) target = $region25
    $region24: #{gamma_beta.1} parent=1 // pred_region
      %v29 = vld [vmem:[%s3] sm:$0x1]
      %v31 = vlaneseq
      %v32 = vshrl.u32 %v31, 7
      %v33 = vsub.s32 0, %v32
      %v34 = vrot.slane %v29, %v33
      %vm36 = vcmask 130048
      %37 = vst.msk [vmem:[#allocation2] sm:$0xff] %vm36, %v34
      %v38 = vld [vmem:[%s4] sm:$0x1]
      %v40 = vlaneseq
      %v41 = vshrl.u32 %v40, 7
      %v42 = vsub.s32 0, %v41
      %v43 = vrot.slane %v38, %v42
      %45 = vst.msk [vmem:[#allocation4] sm:$0xff] %vm36, %v43
    $region25: #{gamma_beta.1} parent=1 // pred_fallthru
      _
    %v46 = vld [vmem:[%s0] sm:$0xf]
    %v47 = vld [vmem:[#allocation2] sm:$0xff]
    %v48 = vld [vmem:[%s1] sm:$0xf]
    %v49 = vld [vmem:[%s1 + $0x4] sm:$0xf]
    %v50 = vld [vmem:[%s1 + $0x8] sm:$0xf]
    %v51 = vld [vmem:[%s1 + $0xc] sm:$0xf]
    %v56 = vunpack.c.l.b16 %v48
    %v57 = vunpack.c.l.b16 %v49
    %v58 = vunpack.c.l.b16 %v50
    %v59 = vunpack.c.l.b16 %v51
    %v60 = vpack.c.b16 %v57, %v56
    %v61 = vpack.c.b16 %v59, %v58
    %vm64 = vcmask 261120
    %v66 = vsel %vm64, %v46, 0
    %68 = vmatprep.subr.bf16.mxu0 0
    %69 = vmatpush1.bf16.msra.mxu0 0
    %70 = vmatprep.subr.bf16.mxu0 0
    %71 = vmatpush1.bf16.msra.mxu0 0
    %72 = vmatprep.subr.bf16.mxu0 0
    %73 = vmatpush1.bf16.msra.mxu0 0
    %74 = vmatprep.subr.bf16.mxu0 0
    %75 = vmatpush1.bf16.msra.mxu0 0
    %76 = vmatprep.subr.bf16.mxu0 0
    %77 = vmatpush1.bf16.msra.mxu0 0
    %78 = vmatprep.subr.bf16.mxu0 0
    %79 = vmatpush1.bf16.msra.mxu0 0
    %80 = vmatprep.subr.bf16.mxu0 0
    %81 = vmatpush1.bf16.msra.mxu0 %v61
    %82 = vmatprep.subr.bf16.mxu0 0
    %83 = vmatpush1.bf16.msra.mxu0 %v60
    %84 = vmatprep.subr.bf16.mxu0 0
    %85 = vmatpush2.bf16.msra.mxu0 0
    %86 = vmatprep.subr.bf16.mxu0 0
    %87 = vmatpush2.bf16.msra.mxu0 0
    %88 = vmatprep.subr.bf16.mxu0 0
    %89 = vmatpush2.bf16.msra.mxu0 0
    %90 = vmatprep.subr.bf16.mxu0 0
    %91 = vmatpush2.bf16.msra.mxu0 0
    %92 = vmatprep.subr.bf16.mxu0 0
    %93 = vmatpush2.bf16.msra.mxu0 0
    %94 = vmatprep.subr.bf16.mxu0 0
    %95 = vmatpush2.bf16.msra.mxu0 0
    %96 = vmatprep.subr.bf16.mxu0 0
    %97 = vmatpush2.bf16.msra.mxu0 0
    %98 = vmatprep.subr.bf16.mxu0 0
    %99 = vmatpush2.bf16.msra.mxu0 0
    %100 = vmatprep.mubr.bf16.mxu0 0
    %101 = vmatmul.mubr.bf16.gmra.mxu0 %v66
    %v102 = vpop.f32.mrf.mxu0
    %v103 = vadd.f32 0.0, %v102
    %v104 = vpop.f32.mrf.mxu0
    %v105 = vpop.f32.mrf.mxu0
    %v106 = vpop.f32.mrf.mxu0
    %107 = vdwg.mxu0
    %v108 = vadd.f32 %v47, %v103
    %vm109 = vcmask 130048
    %110 = vst.msk [vmem:[#allocation2] sm:$0xff] %vm109, %v108
    %v111 = vld [vmem:[#allocation4] sm:$0xff]
    %v112 = vld [vmem:[%s2] sm:$0xf]
    %v113 = vld [vmem:[%s2 + $0x4] sm:$0xf]
    %v114 = vld [vmem:[%s2 + $0x8] sm:$0xf]
    %v115 = vld [vmem:[%s2 + $0xc] sm:$0xf]
    %v120 = vunpack.c.l.b16 %v112
    %v121 = vunpack.c.l.b16 %v113
    %v122 = vunpack.c.l.b16 %v114
    %v123 = vunpack.c.l.b16 %v115
    %v124 = vpack.c.b16 %v121, %v120
    %v125 = vpack.c.b16 %v123, %v122
    %128 = vmatprep.subr.bf16.mxu0 0
    %129 = vmatpush1.bf16.msra.mxu0 0
    %130 = vmatprep.subr.bf16.mxu0 0
    %131 = vmatpush1.bf16.msra.mxu0 0
    %132 = vmatprep.subr.bf16.mxu0 0
    %133 = vmatpush1.bf16.msra.mxu0 0
    %134 = vmatprep.subr.bf16.mxu0 0
    %135 = vmatpush1.bf16.msra.mxu0 0
    %136 = vmatprep.subr.bf16.mxu0 0
    %137 = vmatpush1.bf16.msra.mxu0 0
    %138 = vmatprep.subr.bf16.mxu0 0
    %139 = vmatpush1.bf16.msra.mxu0 0
    %140 = vmatprep.subr.bf16.mxu0 0
    %141 = vmatpush1.bf16.msra.mxu0 %v125
    %142 = vmatprep.subr.bf16.mxu0 0
    %143 = vmatpush1.bf16.msra.mxu0 %v124
    %144 = vmatprep.subr.bf16.mxu0 0
    %145 = vmatpush2.bf16.msra.mxu0 0
    %146 = vmatprep.subr.bf16.mxu0 0
    %147 = vmatpush2.bf16.msra.mxu0 0
    %148 = vmatprep.subr.bf16.mxu0 0
    %149 = vmatpush2.bf16.msra.mxu0 0
    %150 = vmatprep.subr.bf16.mxu0 0
    %151 = vmatpush2.bf16.msra.mxu0 0
    %152 = vmatprep.subr.bf16.mxu0 0
    %153 = vmatpush2.bf16.msra.mxu0 0
    %154 = vmatprep.subr.bf16.mxu0 0
    %155 = vmatpush2.bf16.msra.mxu0 0
    %156 = vmatprep.subr.bf16.mxu0 0
    %157 = vmatpush2.bf16.msra.mxu0 0
    %158 = vmatprep.subr.bf16.mxu0 0
    %159 = vmatpush2.bf16.msra.mxu0 0
    %160 = vmatprep.mubr.bf16.mxu0 0
    %161 = vmatmul.mubr.bf16.gmra.mxu0 %v66
    %v162 = vpop.f32.mrf.mxu0
    %v163 = vadd.f32 0.0, %v162
    %v164 = vpop.f32.mrf.mxu0
    %v165 = vpop.f32.mrf.mxu0
    %v166 = vpop.f32.mrf.mxu0
    %167 = vdwg.mxu0
    %v168 = vadd.f32 %v111, %v163
    %169 = vst.msk [vmem:[#allocation4] sm:$0xff] %vm109, %v168
    // Predicated region
    $region26: #{gamma_beta.1} parent=1 // pred_check
      _
    $region27: #{gamma_beta.1} parent=1 // pred_check_branch
      %171 = sbr.rel (0) target = $region29
    $region28: #{gamma_beta.1} parent=1 // pred_region
      %s173 = ssub.s32 128, 128
      %174 = vsyncadd [#allocation3], %s173
      %s176 = sshll.u32 [#allocation2], 4
      %s177 = int_to_ptr.vmem [resolvable:$true] %s176
      %179 = dma.vmem_to_hbm [thread:$0]  %s177, 128, %s5, [#allocation3]
    $region29: #{gamma_beta.1} parent=1 // pred_fallthru
      _
    // Predicated region
    $region30: #{gamma_beta.1} parent=1 // pred_check
      _
    $region31: #{gamma_beta.1} parent=1 // pred_check_branch
      %181 = sbr.rel (0) target = $region33
    $region32: #{gamma_beta.1} parent=1 // pred_region
      %s183 = ssub.s32 128, 128
      %184 = vsyncadd [#allocation5], %s183
      %s186 = sshll.u32 [#allocation4], 4
      %s187 = int_to_ptr.vmem [resolvable:$true] %s186
      %189 = dma.vmem_to_hbm [thread:$0]  %s187, 128, %s6, [#allocation5]
    $region33: #{gamma_beta.1} parent=1 // pred_fallthru
      _
    // Predicated region
    $region34: #{gamma_beta.1} parent=1 // pred_check
      _
    $region35: #{gamma_beta.1} parent=1 // pred_check_branch
      %191 = sbr.rel (0) target = $region37
    $region36: #{gamma_beta.1} parent=1 // pred_region
      %192 = dma.done [#allocation3], 128
    $region37: #{gamma_beta.1} parent=1 // pred_fallthru
      _
    // Predicated region
    $region38: #{gamma_beta.1} parent=1 // pred_check
      _
    $region39: #{gamma_beta.1} parent=1 // pred_check_branch
      %194 = sbr.rel (0) target = $region41
    $region40: #{gamma_beta.1} parent=1 // pred_region
      %195 = dma.done [#allocation5], 128
    $region41: #{gamma_beta.1} parent=1 // pred_fallthru
      _
    %196 = vsyncpa [#allocation3], 1
    %197 = vsyncpa [#allocation5], 1

</llo_original>
